<compile_context>
chip_gen: v5e
topology: v5e:2x2
jax: 0.10.0
libtpu: 0.0.40
codegen_flags: <defaults>
</compile_context>

<pallas_src>
import functools

import jax
import jax.numpy as jnp
import numpy as np
from jax.experimental import pallas as pl
from jax.experimental.pallas import tpu as pltpu


def _ce_ls_cb_kernel(x_ref, labels_ref, w_ref, loss_ref, *,
                     epsilon, num_classes, batch_size, block_b):
    """One batch tile: (TB, C) logits -> (TB, 1) per-sample CB+LS CE loss."""
    x = x_ref[...].astype(jnp.float32)      # (TB, C) logits (upcast in-kernel)
    labels = labels_ref[...]                # (TB, 1) int32
    w = w_ref[...]                          # (TB, 1) f32 per-sample CB weight

    tb, c = x.shape

    # Numerically stable log-softmax pieces (per row).  Blocks cover the full
    # class dim, so Mosaic masks lane padding inside the reductions itself.
    m = jnp.max(x, axis=1, keepdims=True)                          # (TB, 1)
    e = jnp.exp(x - m)                                             # EUP
    sum_exp = jnp.sum(e, axis=1, keepdims=True)                    # (TB, 1)
    lse = m + jnp.log(sum_exp)                                     # (TB, 1)

    # x[b, label_b] via select + row sum (single one-hot lane is nonzero).
    class_ids = jax.lax.broadcasted_iota(jnp.int32, (tb, c), 1)
    x_at_label = jnp.sum(jnp.where(class_ids == labels, x, 0.0),
                         axis=1, keepdims=True)                    # (TB, 1)
    sum_x = jnp.sum(x, axis=1, keepdims=True)                      # (TB, 1)

    # loss_b = -w_b * ((1-eps) * logp[label_b] + (eps/K) * sum_c logp_bc)
    #   logp[label] = x[label] - lse ;  sum_c logp = sum_c x - K * lse
    k = float(num_classes)
    logp_label = x_at_label - lse
    sum_logp = sum_x - k * lse
    loss = -w * ((1.0 - float(epsilon)) * logp_label
                 + (float(epsilon) / k) * sum_logp)                # (TB, 1)

    # Mask rows of a ragged last batch tile (select, not multiply: padded rows
    # may hold inf/NaN garbage and must not propagate).
    row_ids = jax.lax.broadcasted_iota(jnp.int32, (tb, 1), 0)
    row_valid = (pl.program_id(0) * block_b + row_ids) < batch_size
    loss_ref[...] = jnp.where(row_valid, loss, 0.0)


def _vmem_capacity_bytes():
    try:
        return int(pltpu.get_tpu_info().vmem_capacity_bytes)
    except Exception:
        return 64 * 1024 * 1024          # conservative (v7x-sized) fallback


def _pick_block_b(batch, num_classes, itemsize, vmem_bytes):
    """Largest batch tile whose streamed block + f32 temporaries fit a
    conservative slice of VMEM, capped so the grid has >= 2 tiles (2 TCs)."""
    sublane_pack = 8 * max(1, 4 // max(1, itemsize))   # rows per vreg for dtype
    # Per-row VMEM cost: double-buffered native-dtype logits block plus ~6
    # live f32 (TB, C) temporaries (upcast x, x-m, exp, iota, compare/select).
    bytes_per_row = num_classes * (2 * itemsize + 6 * 4) + 64
    budget = min(vmem_bytes // 3, 24 * 1024 * 1024)
    tb = max(1, budget // bytes_per_row)
    tb = max(sublane_pack, (tb // sublane_pack) * sublane_pack)
    # At least two tiles (when the batch allows) so both v7x TensorCores get
    # work on the "parallel" grid axis; harmless on 1-TC v5e/v6e.
    half = pl.cdiv(pl.cdiv(batch, 2), sublane_pack) * sublane_pack
    tb = min(tb, half)
    if batch <= tb:
        return batch                     # single tile == full batch dim
    return tb


def cross_entropy_label_smooth_cb(inputs, targets, samples_per_cls,
                                  beta, gamma, *, num_classes,
                                  epsilon=0.1, reduction=True, block_b=None):
    """JAX/Pallas port of CrossEntropyLabelSmooth_cb.forward.

    inputs:  (B, C) float logits (any float dtype; upcast to f32 in-kernel)
    targets: (B,) int labels
    samples_per_cls: length-C per-class sample counts
    beta, gamma: CB-loss hyperparameters (gamma is unused, as in the reference)
    """
    del gamma  # unused in the reference softmax CB path
    B, C = inputs.shape
    assert C == num_classes

    # Per-class class-balanced weights ((1-beta)/(1-beta^n), normalized to sum
    # to C), in float64 numpy exactly like the PyTorch host-side cal_weights.
    spc = np.asarray(samples_per_cls, dtype=np.float64)
    effective_num = 1.0 - np.power(float(beta), spc)
    weights = (1.0 - float(beta)) / effective_num
    weights = weights / np.sum(weights) * num_classes
    weights = jnp.asarray(weights, dtype=jnp.float32)               # (C,)

    targets = targets.astype(jnp.int32)
    labels_2d = targets.reshape(B, 1)
    # Per-sample CB weight gathered once in XLA (B floats) instead of a
    # (TB, C) one-hot multiply + reduce inside the kernel.
    w_b = weights[targets].reshape(B, 1)

    itemsize = jnp.dtype(inputs.dtype).itemsize
    vmem_bytes = _vmem_capacity_bytes()
    if block_b is None:
        block_b = _pick_block_b(B, C, itemsize, vmem_bytes)
    block_b = int(block_b)
    ntiles = pl.cdiv(B, block_b)

    kernel = functools.partial(_ce_ls_cb_kernel,
                               epsilon=float(epsilon),
                               num_classes=int(num_classes),
                               batch_size=int(B),
                               block_b=block_b)

    cost = pl.CostEstimate(
        flops=12 * B * C,
        transcendentals=B * C,
        bytes_accessed=B * C * itemsize + B * 12 + ntiles * block_b * 4,
    )

    per_sample = pl.pallas_call(
        kernel,
        out_shape=jax.ShapeDtypeStruct((ntiles * block_b, 1), jnp.float32),
        grid=(ntiles,),
        in_specs=[
            pl.BlockSpec((block_b, C), lambda i: (i, 0)),   # logits, native dtype
            pl.BlockSpec((block_b, 1), lambda i: (i, 0)),   # labels
            pl.BlockSpec((block_b, 1), lambda i: (i, 0)),   # per-sample CB weight
        ],
        out_specs=pl.BlockSpec((block_b, 1), lambda i: (i, 0)),
        compiler_params=pltpu.CompilerParams(
            dimension_semantics=("parallel",),
            vmem_limit_bytes=int(min(vmem_bytes * 3 // 4, 96 * 1024 * 1024))),
        cost_estimate=cost,
    )(inputs, labels_2d, w_b)

    per_sample = per_sample[:B, 0]
    if reduction:
        return jnp.mean(per_sample)
    return per_sample


def _reference_jax(inputs, targets, samples_per_cls, beta, epsilon, num_classes,
                   reduction=True):
    """Pure-JAX reference matching the PyTorch module semantics."""
    log_probs = jax.nn.log_softmax(inputs.astype(jnp.float32), axis=1)
    onehot = jax.nn.one_hot(targets, num_classes, dtype=jnp.float32)
    smoothed = (1.0 - epsilon) * onehot + epsilon / num_classes
    eff = 1.0 - np.power(beta, np.asarray(samples_per_cls, dtype=np.float64))
    w = (1.0 - beta) / eff
    w = w / np.sum(w) * num_classes
    w = jnp.asarray(w, dtype=jnp.float32)
    w_b = jnp.sum(onehot * w[None, :], axis=1, keepdims=True)
    loss = jnp.sum(-w_b * smoothed * log_probs, axis=1)
    return jnp.mean(loss) if reduction else loss


if __name__ == "__main__":
    epsilon = 0.1
    beta = 0.999
    gamma = 2.0

    # --- Test 1: small, single tile, reduction=True (module default).
    #     Also exercises unmasked class reductions at C=16 (not a 128-multiple).
    B, C = 8, 16
    key = jax.random.PRNGKey(0)
    k_x, k_t, k_x2, k_t2 = jax.random.split(key, 4)
    inputs = jax.random.normal(k_x, (B, C), dtype=jnp.float32)
    targets = jax.random.randint(k_t, (B,), 0, C, dtype=jnp.int32)
    samples_per_cls = np.arange(1, C + 1, dtype=np.float64) * 10.0

    loss = cross_entropy_label_smooth_cb(
        inputs, targets, samples_per_cls, beta, gamma,
        num_classes=C, epsilon=epsilon, reduction=True)
    loss = jax.block_until_ready(loss)
    ref = jax.block_until_ready(
        _reference_jax(inputs, targets, samples_per_cls, beta, epsilon, C))
    assert np.allclose(np.asarray(loss), np.asarray(ref), rtol=1e-5, atol=1e-5), (
        loss, ref)

    # --- Test 2: batch-tiled grid with a ragged last tile, reduction=False ---
    B2 = 40
    inputs2 = jax.random.normal(k_x2, (B2, C), dtype=jnp.float32)
    targets2 = jax.random.randint(k_t2, (B2,), 0, C, dtype=jnp.int32)

    per = cross_entropy_label_smooth_cb(
        inputs2, targets2, samples_per_cls, beta, gamma,
        num_classes=C, epsilon=epsilon, reduction=False, block_b=16)  # 3 tiles, last ragged
    per = jax.block_until_ready(per)
    per_ref = jax.block_until_ready(
        _reference_jax(inputs2, targets2, samples_per_cls, beta, epsilon, C,
                       reduction=False))
    assert per.shape == (B2,)
    assert np.allclose(np.asarray(per), np.asarray(per_ref), rtol=1e-5, atol=1e-5), (
        per, per_ref)

    # --- Test 3: auto-picked block size path (reduction=True) ---
    loss2 = cross_entropy_label_smooth_cb(
        inputs2, targets2, samples_per_cls, beta, gamma,
        num_classes=C, epsilon=epsilon, reduction=True)
    loss2 = jax.block_until_ready(loss2)
    ref2 = jax.block_until_ready(
        _reference_jax(inputs2, targets2, samples_per_cls, beta, epsilon, C))
    assert np.allclose(np.asarray(loss2), np.asarray(ref2), rtol=1e-5, atol=1e-5), (
        loss2, ref2)

    print("KERNEL_OK")
</pallas_src>

<mosaic_0001>
module attributes {stable_mosaic.version = 11 : i64} {
  func.func @_ce_ls_cb_kernel(%arg0: i32, %arg1: memref<8x16xf32, #tpu.memory_space<vmem>>, %arg2: memref<8x1xi32, #tpu.memory_space<vmem>>, %arg3: memref<8x1xf32, #tpu.memory_space<vmem>>, %arg4: memref<8x1xf32, #tpu.memory_space<vmem>>) attributes {dimension_semantics = [#tpu.dimension_semantics<parallel>], iteration_bounds = array<i64: 1>, scalar_prefetch = 0 : i64, scratch_operands = 0 : i64, tpu.core_type = #tpu.core_type<tc>, window_params = [{transform_indices = @transform_0, window_bounds = array<i64: 8, 16>}, {transform_indices = @transform_1, window_bounds = array<i64: 8, 1>}, {transform_indices = @transform_2, window_bounds = array<i64: 8, 1>}, {transform_indices = @transform_3, window_bounds = array<i64: 8, 1>}]} {
    %c0 = arith.constant 0 : index
    %c0_0 = arith.constant 0 : index
    %0 = vector.load %arg1[%c0, %c0_0] : memref<8x16xf32, #tpu.memory_space<vmem>>, vector<8x16xf32>
    %c0_1 = arith.constant 0 : index
    %c0_2 = arith.constant 0 : index
    %1 = vector.load %arg2[%c0_1, %c0_2] : memref<8x1xi32, #tpu.memory_space<vmem>>, vector<8x1xi32>
    %c0_3 = arith.constant 0 : index
    %c0_4 = arith.constant 0 : index
    %2 = vector.load %arg3[%c0_3, %c0_4] : memref<8x1xf32, #tpu.memory_space<vmem>>, vector<8x1xf32>
    %cst = arith.constant dense<0xFF800000> : vector<8xf32>
    %3 = vector.multi_reduction <maximumf>, %0, %cst [1] : vector<8x16xf32> to vector<8xf32>
    %4 = vector.shape_cast %3 : vector<8xf32> to vector<8x1xf32>
    %5 = vector.broadcast %4 : vector<8x1xf32> to vector<8x16xf32>
    %6 = arith.subf %0, %5 : vector<8x16xf32>
    %7 = math.exp %6 : vector<8x16xf32>
    %cst_5 = arith.constant dense<0.000000e+00> : vector<8xf32>
    %8 = vector.multi_reduction <add>, %7, %cst_5 [1] : vector<8x16xf32> to vector<8xf32>
    %9 = vector.shape_cast %8 : vector<8xf32> to vector<8x1xf32>
    %10 = math.log %9 : vector<8x1xf32>
    %11 = arith.addf %4, %10 : vector<8x1xf32>
    %12 = tpu.iota {dimensions = array<i32: 1>} : vector<8x16xi32>
    %13 = vector.broadcast %1 : vector<8x1xi32> to vector<8x16xi32>
    %14 = arith.cmpi eq, %12, %13 : vector<8x16xi32>
    %cst_6 = arith.constant 0.000000e+00 : f32
    %15 = vector.broadcast %cst_6 : f32 to vector<8x16xf32>
    %16 = arith.select %14, %0, %15 : vector<8x16xi1>, vector<8x16xf32>
    %cst_7 = arith.constant dense<0.000000e+00> : vector<8xf32>
    %17 = vector.multi_reduction <add>, %16, %cst_7 [1] : vector<8x16xf32> to vector<8xf32>
    %18 = vector.shape_cast %17 : vector<8xf32> to vector<8x1xf32>
    %cst_8 = arith.constant dense<0.000000e+00> : vector<8xf32>
    %19 = vector.multi_reduction <add>, %0, %cst_8 [1] : vector<8x16xf32> to vector<8xf32>
    %20 = vector.shape_cast %19 : vector<8xf32> to vector<8x1xf32>
    %21 = arith.subf %18, %11 : vector<8x1xf32>
    %cst_9 = arith.constant 1.600000e+01 : f32
    %22 = vector.broadcast %cst_9 : f32 to vector<8x1xf32>
    %23 = arith.mulf %22, %11 : vector<8x1xf32>
    %24 = arith.subf %20, %23 : vector<8x1xf32>
    %cst_10 = arith.constant 0.000000e+00 : f32
    %25 = vector.broadcast %cst_10 : f32 to vector<8x1xf32>
    %26 = arith.subf %25, %2 : vector<8x1xf32>
    %cst_11 = arith.constant 0.899999976 : f32
    %27 = vector.broadcast %cst_11 : f32 to vector<8x1xf32>
    %28 = arith.mulf %27, %21 : vector<8x1xf32>
    %cst_12 = arith.constant 6.250000e-03 : f32
    %29 = vector.broadcast %cst_12 : f32 to vector<8x1xf32>
    %30 = arith.mulf %29, %24 : vector<8x1xf32>
    %31 = arith.addf %28, %30 : vector<8x1xf32>
    %32 = arith.mulf %26, %31 : vector<8x1xf32>
    %33 = tpu.iota {dimensions = array<i32: 0>} : vector<8x1xi32>
    %c8_i32 = arith.constant 8 : i32
    %34 = arith.muli %arg0, %c8_i32 : i32
    %35 = vector.broadcast %34 : i32 to vector<8x1xi32>
    %36 = arith.addi %35, %33 : vector<8x1xi32>
    %c8_i32_13 = arith.constant 8 : i32
    %37 = vector.broadcast %c8_i32_13 : i32 to vector<8x1xi32>
    %38 = arith.cmpi slt, %36, %37 : vector<8x1xi32>
    %cst_14 = arith.constant 0.000000e+00 : f32
    %39 = vector.broadcast %cst_14 : f32 to vector<8x1xf32>
    %40 = arith.select %38, %32, %39 : vector<8x1xi1>, vector<8x1xf32>
    %c0_15 = arith.constant 0 : index
    %c0_16 = arith.constant 0 : index
    %41 = vector.load %arg4[%c0_15, %c0_16] : memref<8x1xf32, #tpu.memory_space<vmem>>, vector<8x1xf32>
    tpu.vector_store %arg4[%c0_15, %c0_16], %40 {strides = array<i32>} : memref<8x1xf32, #tpu.memory_space<vmem>>, vector<8x1xf32>,
    return
  }
  func.func @transform_0(%arg0: i32) -> (i32, i32) {
    %c0_i32 = arith.constant 0 : i32
    %c0_i32_0 = arith.constant 0 : i32
    return %arg0, %c0_i32 : i32, i32
  }
  func.func @transform_1(%arg0: i32) -> (i32, i32) {
    %c0_i32 = arith.constant 0 : i32
    %c0_i32_0 = arith.constant 0 : i32
    return %arg0, %c0_i32 : i32, i32
  }
  func.func @transform_2(%arg0: i32) -> (i32, i32) {
    %c0_i32 = arith.constant 0 : i32
    %c0_i32_0 = arith.constant 0 : i32
    return %arg0, %c0_i32 : i32, i32
  }
  func.func @transform_3(%arg0: i32) -> (i32, i32) {
    %c0_i32 = arith.constant 0 : i32
    %c0_i32_0 = arith.constant 0 : i32
    return %arg0, %c0_i32 : i32, i32
  }
}

</mosaic_0001>

<llo_original>
// kernel: tpu_custom_call.1
$region0: #{tpu_custom_call.1}
  #allocation0 [shape = 'u32[]', space=smem, size = 0x4, offset = 0x4, fixed_abs, tag = 'smem constant byte address 0x4 - core index']
  #allocation1 [shape = 'u32[72,128]{1,0:T(1,128)}', space=vmem, size = 0x9000, scoped, tag = 'internal scratch']
  %s0 = inlined_call_operand.vmem [shape: f32[8,16], index: 0, kind: input, shape index: {}]
  %s1 = inlined_call_operand.vmem [shape: s32[8,1], index: 1, kind: input, shape index: {}]
  %s2 = inlined_call_operand.vmem [shape: f32[8,1], index: 2, kind: input, shape index: {}]
  %s3 = inlined_call_operand.vmem [shape: f32[8,1], index: 3, kind: output, shape index: {}]
  %s4 = sld [smem:[#allocation0]]
  $region22: #{tpu_custom_call.1} parent=0
    _
  %s6 = ssub.s32 1, %s4
  %s7 = scalar_select 0, %s6, %s4
  // Predicated region
  $region2: #{tpu_custom_call.1} parent=0 // pred_check
    _
  $region3: #{tpu_custom_call.1} parent=0 // pred_check_branch
    %9 = sbr.rel (0) target = $region5
  $region4: #{tpu_custom_call.1} parent=0 // pred_region
    _
  $region5: #{tpu_custom_call.1} parent=0 // pred_fallthru
    _
  // Predicated region
  $region6: #{tpu_custom_call.1} parent=0 // pred_check
    _
  $region7: #{tpu_custom_call.1} parent=0 // pred_check_branch
    %11 = sbr.rel (0) target = $region9
  $region8: #{tpu_custom_call.1} parent=0 // pred_region
    _
  $region9: #{tpu_custom_call.1} parent=0 // pred_fallthru
    _
  // Predicated region
  $region10: #{tpu_custom_call.1} parent=0 // pred_check
    _
  $region11: #{tpu_custom_call.1} parent=0 // pred_check_branch
    %13 = sbr.rel (0) target = $region13
  $region12: #{tpu_custom_call.1} parent=0 // pred_region
    _
  $region13: #{tpu_custom_call.1} parent=0 // pred_fallthru
    _
  %v14 = vld [vmem:[%s0] sm:$0xff]
  %v15 = vld [vmem:[%s1] sm:$0xff]
  %v16 = vld [vmem:[%s2] sm:$0xff]
  %vm17 = vcmask 130048
  %v18 = vsel %vm17, %v14, -inf
  %19 = vmax.xlane.f32.xlu0 %v18
  %v20 = vpop.xlane.xlu0 %19
  %v21 = vsub.f32 %v14, %v20
  %v22 = vmul.f32 %v21, 1.442695
  %v23 = vpow.pop %v22
  %v24 = vsel %vm17, %v23, 0.0
  %25 = vadd.xlane.f32.xlu0 %v24
  %v26 = vpop.xlane.xlu0 %25
  %v27 = vlog2.pop %v26
  %v28 = vmul.f32 %v27, 0.6931472
  %v29 = vadd.f32 %v20, %v28
  %v30 = vlaneseq
  %v31 = vand.u32 %v30, 127
  %32 = vset.pattern.permute.xlu0 0
  %33 = vperm.xlu0 %32, %v15
  %v34 = vpop.permute.xlu0 %33
  %vm35 = vcmp.eq.s32.totalorder %v31, %v34
  %v36 = vsel %vm35, %v14, 0.0
  %v37 = vsel %vm17, %v36, 0.0
  %38 = vadd.xlane.f32.xlu0 %v37
  %v39 = vpop.xlane.xlu0 %38
  %v40 = vsel %vm17, %v14, 0.0
  %41 = vadd.xlane.f32.xlu0 %v40
  %v42 = vpop.xlane.xlu0 %41
  %v43 = vsub.f32 %v39, %v29
  %v44 = vmul.f32 %v29, 16.0
  %v45 = vsub.f32 %v42, %v44
  %v46 = vsub.f32 0.0, %v16
  %v47 = vmul.f32 %v43, 0.9
  %v48 = vmul.f32 %v45, 0.00625
  %v49 = vadd.f32 %v47, %v48
  %v50 = vmul.f32 %v46, %v49
  %v51 = vlaneseq
  %v52 = vshrl.u32 %v51, 7
  %s53 = smul.u32 0, 8
  %v54 = vstv %s53
  %v55 = vadd.s32 %v54, %v52
  %vm56 = vcmp.lt.s32.totalorder %v55, 8
  %v57 = vsel %vm56, %v50, 0.0
  %vm58 = vcmask 7168
  %59 = vst.msk [vmem:[%s3] sm:$0xff] %vm58, %v57
  // Predicated region
  $region14: #{tpu_custom_call.1} parent=0 // pred_check
    _
  $region15: #{tpu_custom_call.1} parent=0 // pred_check_branch
    %61 = sbr.rel (0) target = $region17
  $region16: #{tpu_custom_call.1} parent=0 // pred_region
    _
  $region17: #{tpu_custom_call.1} parent=0 // pred_fallthru
    _
  // Predicated region
  $region18: #{tpu_custom_call.1} parent=0 // pred_check
    _
  $region19: #{tpu_custom_call.1} parent=0 // pred_check_branch
    %63 = sbr.rel (0) target = $region21
  $region20: #{tpu_custom_call.1} parent=0 // pred_region
    _
  $region21: #{tpu_custom_call.1} parent=0 // pred_fallthru
    _

</llo_original>
